<compile_context>
chip_gen: v7x
topology: tpu7x:2x2x1
jax: 0.10.0
libtpu: 0.0.40
codegen_flags: <defaults>
</compile_context>

<pallas_src>
import jax
import jax.numpy as jnp
from jax.experimental import pallas as pl
from jax.experimental.pallas import tpu as pltpu


def _mlp_kernel(p_ref, y_ref):
    # p_ref: (16,) f32 in SMEM ; y_ref: (1,) f32 in SMEM
    x = p_ref[15]

    # layer 0: h0 = relu(W0 @ x[:, None])   -> h0[i] = relu(W0[i,0] * x)
    h0 = [jnp.maximum(p_ref[i] * x, 0.0) for i in range(3)]

    # layer 1: h1 = relu(W1 @ h0)           -> h1[i] = relu(sum_j W1[i,j]*h0[j])
    h1 = []
    for i in range(3):
        acc = (p_ref[3 + 3 * i + 0] * h0[0]
               + p_ref[3 + 3 * i + 1] * h0[1]
               + p_ref[3 + 3 * i + 2] * h0[2])
        h1.append(jnp.maximum(acc, 0.0))

    # output: y = W2 @ h1                   -> y = sum_j W2[0,j]*h1[j]
    y_ref[0] = p_ref[12] * h1[0] + p_ref[13] * h1[1] + p_ref[14] * h1[2]


def pack_weights(params):
    """Pack W0/W1/W2 into a flat (15,) f32 array. Do this once at init."""
    return jnp.concatenate([
        params["W0"].reshape(-1),
        params["W1"].reshape(-1),   # row-major
        params["W2"].reshape(-1),
    ]).astype(jnp.float32)


@jax.jit
def torch_mlp_forward(packed_w, x):
    """Pallas equivalent of TorchMLP.forward.

    packed_w: (15,) packed weights (from pack_weights)
    x: shape (1,)  (matches torch usage x = tensor([1.0]))
    returns: shape (1,)  (torch: matmul(...).squeeze(-1))
    """
    # 16 floats total: weights + x. Lives entirely in SMEM inside the kernel.
    packed = jnp.concatenate([packed_w, x.astype(jnp.float32).reshape(1)])

    # NOTE: if many x values were evaluated, the right next step is a lane-dense
    # batch axis (up to 128 x's per vreg) with a "parallel" grid dim; kept
    # single-x here to match the module's semantics.
    y = pl.pallas_call(
        _mlp_kernel,
        out_shape=jax.ShapeDtypeStruct((1,), jnp.float32),
        in_specs=[pl.BlockSpec(memory_space=pltpu.MemorySpace.SMEM)],
        out_specs=pl.BlockSpec(memory_space=pltpu.MemorySpace.SMEM),
    )(packed)
    return y  # (1,) == squeeze(-1) of the (1,1) matmul result


def _reference_forward(params, x):
    r0 = params["W0"] @ x[:, None]
    h0 = jnp.maximum(r0, 0.0)
    r1 = params["W1"] @ h0
    h1 = jnp.maximum(r1, 0.0)
    y = params["W2"] @ h1
    return y[:, 0]


if __name__ == "__main__":
    key = jax.random.PRNGKey(0)
    k0, k1, k2 = jax.random.split(key, 3)
    # Deterministic stand-ins for torch.randn parameters (same shapes).
    params = {
        "W0": jax.random.normal(k0, (3, 1), dtype=jnp.float32),
        "W1": jax.random.normal(k1, (3, 3), dtype=jnp.float32),
        "W2": jax.random.normal(k2, (1, 3), dtype=jnp.float32),
    }
    x = jnp.array([1.0], dtype=jnp.float32)

    packed_w = pack_weights(params)          # hoisted out of the per-call path
    y_pred = jax.block_until_ready(torch_mlp_forward(packed_w, x))
    y_ref = _reference_forward(params, x)

    assert y_pred.shape == (1,), y_pred.shape
    assert jnp.allclose(y_pred, y_ref, rtol=1e-5, atol=1e-5), (y_pred, y_ref)
    print("KERNEL_OK")
</pallas_src>

<mosaic_0001>
module attributes {stable_mosaic.version = 11 : i64} {
  func.func @_mlp_kernel(%arg0: memref<16xf32, #tpu.memory_space<smem>>, %arg1: memref<1xf32, #tpu.memory_space<smem>>) attributes {dimension_semantics = [], scalar_prefetch = 0 : i64, scratch_operands = 0 : i64, tpu.core_type = #tpu.core_type<tc>} {
    %c15 = arith.constant 15 : index
    %0 = memref.load %arg0[%c15] : memref<16xf32, #tpu.memory_space<smem>>
    %c0 = arith.constant 0 : index
    %1 = memref.load %arg0[%c0] : memref<16xf32, #tpu.memory_space<smem>>
    %2 = arith.mulf %1, %0 : f32
    %cst = arith.constant 0.000000e+00 : f32
    %3 = arith.maximumf %2, %cst : f32
    %c1 = arith.constant 1 : index
    %4 = memref.load %arg0[%c1] : memref<16xf32, #tpu.memory_space<smem>>
    %5 = arith.mulf %4, %0 : f32
    %cst_0 = arith.constant 0.000000e+00 : f32
    %6 = arith.maximumf %5, %cst_0 : f32
    %c2 = arith.constant 2 : index
    %7 = memref.load %arg0[%c2] : memref<16xf32, #tpu.memory_space<smem>>
    %8 = arith.mulf %7, %0 : f32
    %cst_1 = arith.constant 0.000000e+00 : f32
    %9 = arith.maximumf %8, %cst_1 : f32
    %c3 = arith.constant 3 : index
    %10 = memref.load %arg0[%c3] : memref<16xf32, #tpu.memory_space<smem>>
    %11 = arith.mulf %10, %3 : f32
    %c4 = arith.constant 4 : index
    %12 = memref.load %arg0[%c4] : memref<16xf32, #tpu.memory_space<smem>>
    %13 = arith.mulf %12, %6 : f32
    %14 = arith.addf %11, %13 : f32
    %c5 = arith.constant 5 : index
    %15 = memref.load %arg0[%c5] : memref<16xf32, #tpu.memory_space<smem>>
    %16 = arith.mulf %15, %9 : f32
    %17 = arith.addf %14, %16 : f32
    %cst_2 = arith.constant 0.000000e+00 : f32
    %18 = arith.maximumf %17, %cst_2 : f32
    %c6 = arith.constant 6 : index
    %19 = memref.load %arg0[%c6] : memref<16xf32, #tpu.memory_space<smem>>
    %20 = arith.mulf %19, %3 : f32
    %c7 = arith.constant 7 : index
    %21 = memref.load %arg0[%c7] : memref<16xf32, #tpu.memory_space<smem>>
    %22 = arith.mulf %21, %6 : f32
    %23 = arith.addf %20, %22 : f32
    %c8 = arith.constant 8 : index
    %24 = memref.load %arg0[%c8] : memref<16xf32, #tpu.memory_space<smem>>
    %25 = arith.mulf %24, %9 : f32
    %26 = arith.addf %23, %25 : f32
    %cst_3 = arith.constant 0.000000e+00 : f32
    %27 = arith.maximumf %26, %cst_3 : f32
    %c9 = arith.constant 9 : index
    %28 = memref.load %arg0[%c9] : memref<16xf32, #tpu.memory_space<smem>>
    %29 = arith.mulf %28, %3 : f32
    %c10 = arith.constant 10 : index
    %30 = memref.load %arg0[%c10] : memref<16xf32, #tpu.memory_space<smem>>
    %31 = arith.mulf %30, %6 : f32
    %32 = arith.addf %29, %31 : f32
    %c11 = arith.constant 11 : index
    %33 = memref.load %arg0[%c11] : memref<16xf32, #tpu.memory_space<smem>>
    %34 = arith.mulf %33, %9 : f32
    %35 = arith.addf %32, %34 : f32
    %cst_4 = arith.constant 0.000000e+00 : f32
    %36 = arith.maximumf %35, %cst_4 : f32
    %c12 = arith.constant 12 : index
    %37 = memref.load %arg0[%c12] : memref<16xf32, #tpu.memory_space<smem>>
    %38 = arith.mulf %37, %18 : f32
    %c13 = arith.constant 13 : index
    %39 = memref.load %arg0[%c13] : memref<16xf32, #tpu.memory_space<smem>>
    %40 = arith.mulf %39, %27 : f32
    %41 = arith.addf %38, %40 : f32
    %c14 = arith.constant 14 : index
    %42 = memref.load %arg0[%c14] : memref<16xf32, #tpu.memory_space<smem>>
    %43 = arith.mulf %42, %36 : f32
    %44 = arith.addf %41, %43 : f32
    %c0_5 = arith.constant 0 : index
    %45 = memref.load %arg1[%c0_5] : memref<1xf32, #tpu.memory_space<smem>>
    memref.store %44, %arg1[%c0_5] : memref<1xf32, #tpu.memory_space<smem>>
    return
  }
}

</mosaic_0001>

<llo_original>
// kernel: torch_mlp_forward.1
$region0: #{torch_mlp_forward.1}
  #allocation0 [shape = 'u32[]', space=smem, size = 0x4, offset = 0x4, fixed_abs, tag = 'smem constant byte address 0x4 - core index']
  #allocation1 [shape = 'u32[144,128]{1,0:T(1,128)}', space=vmem, size = 0x12000, scoped, tag = 'internal scratch']
  %s0 = inlined_call_operand.vmem [shape: f32[16], index: 0, kind: input, shape index: {}]
  %s1 = inlined_call_operand.hbm [shape: f32[1], index: 1, kind: output, shape index: {}]
  %s2 = sld [smem:[#allocation0]]
  $region18: #{torch_mlp_forward.1} parent=0
    _
  %s4 = ssub.s32 1, %s2
  %s5 = scalar_select 0, %s4, %s2
  $region1: #{torch_mlp_forward.1} parent=0
    #allocation2 [shape = 'u8[512]{0}', space=smem, size = 0x200, scoped, tag = 'input window, operand 0, single buffered']
    #allocation3 [shape = 's32[1]{0}', space=sflag, size = 0x4, scoped, tag = 'scoped memory for torch_mlp_forward.1']
    #allocation4 [shape = 's32[1]{0}', space=sflag, size = 0x4, scoped, tag = 'scoped memory for torch_mlp_forward.1']
    #allocation5 [shape = 'u8[512]{0}', space=smem, size = 0x200, scoped, tag = 'output window, operand 0, single buffered']
    %6 = vsyncpa [#allocation4], 0
    %7 = vsyncpa [#allocation3], 0
    // Predicated region
    $region2: #{torch_mlp_forward.1} parent=1 // pred_check
      _
    $region3: #{torch_mlp_forward.1} parent=1 // pred_check_branch
      %9 = sbr.rel (0) target = $region5
    $region4: #{torch_mlp_forward.1} parent=1 // pred_region
      %s11 = ssub.s32 16, 16
      %12 = vsyncadd [#allocation4], %s11
      %s14 = sshll.u32 %s0, 4
      %s15 = int_to_ptr.vmem [resolvable:$true] %s14
      %17 = dma.vmem_to_smem %s15, 16, [#allocation2], [#allocation4]
    $region5: #{torch_mlp_forward.1} parent=1 // pred_fallthru
      _
    // Predicated region
    $region6: #{torch_mlp_forward.1} parent=1 // pred_check
      _
    $region7: #{torch_mlp_forward.1} parent=1 // pred_check_branch
      %19 = sbr.rel (0) target = $region9
    $region8: #{torch_mlp_forward.1} parent=1 // pred_region
      %20 = dma.done [#allocation4], 16
    $region9: #{torch_mlp_forward.1} parent=1 // pred_fallthru
      _
    %21 = sfence
    %s22 = sld [smem:[#allocation2 + $0xf]]
    %s23 = sld [smem:[#allocation2]]
    %s24 = smul.f32 %s23, %s22
    %s25 = smax.f32 %s24, 0.0
    %s26 = sld [smem:[#allocation2 + $0x1]]
    %s27 = smul.f32 %s26, %s22
    %s28 = smax.f32 %s27, 0.0
    %s29 = sld [smem:[#allocation2 + $0x2]]
    %s30 = smul.f32 %s29, %s22
    %s31 = smax.f32 %s30, 0.0
    %s32 = sld [smem:[#allocation2 + $0x3]]
    %s33 = smul.f32 %s32, %s25
    %s34 = sld [smem:[#allocation2 + $0x4]]
    %s35 = smul.f32 %s34, %s28
    %s36 = sadd.f32 %s33, %s35
    %s37 = sld [smem:[#allocation2 + $0x5]]
    %s38 = smul.f32 %s37, %s31
    %s39 = sadd.f32 %s36, %s38
    %s40 = smax.f32 %s39, 0.0
    %s41 = sld [smem:[#allocation2 + $0x6]]
    %s42 = smul.f32 %s41, %s25
    %s43 = sld [smem:[#allocation2 + $0x7]]
    %s44 = smul.f32 %s43, %s28
    %s45 = sadd.f32 %s42, %s44
    %s46 = sld [smem:[#allocation2 + $0x8]]
    %s47 = smul.f32 %s46, %s31
    %s48 = sadd.f32 %s45, %s47
    %s49 = smax.f32 %s48, 0.0
    %s50 = sld [smem:[#allocation2 + $0x9]]
    %s51 = smul.f32 %s50, %s25
    %s52 = sld [smem:[#allocation2 + $0xa]]
    %s53 = smul.f32 %s52, %s28
    %s54 = sadd.f32 %s51, %s53
    %s55 = sld [smem:[#allocation2 + $0xb]]
    %s56 = smul.f32 %s55, %s31
    %s57 = sadd.f32 %s54, %s56
    %s58 = smax.f32 %s57, 0.0
    %s59 = sld [smem:[#allocation2 + $0xc]]
    %s60 = smul.f32 %s59, %s40
    %s61 = sld [smem:[#allocation2 + $0xd]]
    %s62 = smul.f32 %s61, %s49
    %s63 = sadd.f32 %s60, %s62
    %s64 = sld [smem:[#allocation2 + $0xe]]
    %s65 = smul.f32 %s64, %s58
    %s66 = sadd.f32 %s63, %s65
    %s67 = scalar_lea.smem [#allocation5], 0
    %68 = sst [smem:[%s67]] %s66
    // Predicated region
    $region10: #{torch_mlp_forward.1} parent=1 // pred_check
      _
    $region11: #{torch_mlp_forward.1} parent=1 // pred_check_branch
      %70 = sbr.rel (0) target = $region13
    $region12: #{torch_mlp_forward.1} parent=1 // pred_region
      %s72 = ssub.s32 16, 16
      %73 = vsyncadd [#allocation3], %s72
      %76 = dma.smem_to_hbm [#allocation5], 16, %s1, [#allocation3]
    $region13: #{torch_mlp_forward.1} parent=1 // pred_fallthru
      _
    // Predicated region
    $region14: #{torch_mlp_forward.1} parent=1 // pred_check
      _
    $region15: #{torch_mlp_forward.1} parent=1 // pred_check_branch
      %78 = sbr.rel (0) target = $region17
    $region16: #{torch_mlp_forward.1} parent=1 // pred_region
      %79 = dma.done [#allocation3], 16
    $region17: #{torch_mlp_forward.1} parent=1 // pred_fallthru
      _
    %80 = sfence
    %81 = vsyncpa [#allocation3], 1
    %82 = vsyncpa [#allocation4], 1

</llo_original>
